<compile_context>
chip_gen: v6e
topology: v6e:2x2x1
jax: 0.10.0
libtpu: 0.0.40
codegen_flags: <defaults>
</compile_context>

<pallas_src>
import functools

import jax
import jax.numpy as jnp
from jax import lax
from jax.experimental import pallas as pl
from jax.experimental.pallas import tpu as pltpu

_ROW_GROUP = 8      # rows per output store == f32 sublanes per vreg
_LANE = 128


def _round_up(x, m):
    return (x + m - 1) // m * m


# ---------------------------------------------------------------------------
# Path 1: id-driven gather (general vocabulary sizes).
# ---------------------------------------------------------------------------
def _gather_kernel(ids_ref, table_ref, out_ref, *, seq_len, tile_b):
    # ids_ref:   (b_pad * S,) int32 in SMEM (scalar-prefetched, pre-clamped ids)
    # table_ref: (V, D) embedding table, resident once in VMEM (single buffer)
    # out_ref:   (tile_b, D) output block (mean embeddings for this batch tile)
    tile = pl.program_id(0)
    d_model = out_ref.shape[1]
    inv_s = jnp.float32(1.0 / seq_len)
    n_groups = tile_b // _ROW_GROUP
    tile_base = tile * tile_b * seq_len
    unroll = 4 if seq_len >= 4 else seq_len

    @pl.loop(0, n_groups)
    def _(g):
        base = tile_base + g * _ROW_GROUP * seq_len

        def seq_body(s, accs):
            # 8 independent gather + accumulate chains per step (no clamp here:
            # ids were clamped once in the wrapper).
            return tuple(
                accs[r]
                + table_ref[pl.ds(ids_ref[base + r * seq_len + s], 1), :].astype(
                    jnp.float32)
                for r in range(_ROW_GROUP)
            )

        accs0 = tuple(
            jnp.zeros((1, d_model), jnp.float32) for _ in range(_ROW_GROUP))
        accs = lax.fori_loop(0, seq_len, seq_body, accs0, unroll=unroll)

        row0 = pl.multiple_of(g * _ROW_GROUP, _ROW_GROUP)
        block = jnp.concatenate(accs, axis=0) * inv_s            # (8, D) f32
        out_ref[pl.ds(row0, _ROW_GROUP), :] = block.astype(out_ref.dtype)


# ---------------------------------------------------------------------------
# Path 2: small vocabulary -> one-hot counts + single MXU matmul per tile.
# ---------------------------------------------------------------------------
def _counts_matmul_kernel(ids_ref, table_ref, out_ref, *, seq_len):
    # ids_ref:   (tile_b, S) int32 block in VMEM (pre-clamped ids)
    # table_ref: (V_pad, D) zero-padded table, resident once in VMEM
    # out_ref:   (tile_b, D)
    tile_b = out_ref.shape[0]
    v_pad = table_ref.shape[0]
    inv_s = jnp.float32(1.0 / seq_len)

    ids = ids_ref[...]                                            # (tile_b, S)
    iota_v = lax.broadcasted_iota(jnp.int32, (tile_b, seq_len, v_pad), 2)
    onehot = (ids[:, :, None] == iota_v).astype(jnp.float32)      # (tile_b,S,V_pad)
    counts = onehot.sum(axis=1)                                   # (tile_b, V_pad)
    acc = jnp.dot(counts, table_ref[...].astype(jnp.float32),
                  preferred_element_type=jnp.float32)             # MXU
    out_ref[...] = (acc * inv_s).astype(out_ref.dtype)


# ---------------------------------------------------------------------------
# Wrapper
# ---------------------------------------------------------------------------
def text_adapter_forward(x, table, *, tile_b=None, path=None):
    """x: (B, S) integer token ids, table: (V, D) float -> (B, D) table.dtype.

    Equivalent to nn.Embedding(V, D)(x).mean(dim=1).
    """
    B, S = x.shape
    V, D = table.shape
    itemsize = jnp.dtype(table.dtype).itemsize

    # --- batch tiling -------------------------------------------------------
    if tile_b is None:
        tile_b = min(128, _round_up(B, _ROW_GROUP))
        if B > _ROW_GROUP:
            # Keep >= 2 grid steps so both v7x TensorCores get work.
            tile_b = min(tile_b, _round_up(pl.cdiv(B, 2), _ROW_GROUP))
    tile_b = max(_ROW_GROUP, _round_up(tile_b, _ROW_GROUP))
    b_pad = _round_up(B, tile_b)
    num_tiles = b_pad // tile_b

    # Clamp once here (hoisted out of the kernel hot loop) and pad the batch.
    ids = jnp.clip(x.astype(jnp.int32), 0, V - 1)
    if b_pad != B:
        ids = jnp.pad(ids, ((0, b_pad - B), (0, 0)))   # padded rows use token 0

    # --- path selection -----------------------------------------------------
    v_pad = _round_up(V, _LANE)
    onehot_bytes = tile_b * S * v_pad * 4
    if path is None:
        path = "matmul" if (v_pad <= 1024 and onehot_bytes <= (8 << 20)) else "gather"

    # --- explicit VMEM budget ------------------------------------------------
    table_vmem = (v_pad if path == "matmul" else V) * D * itemsize
    out_vmem = 2 * tile_b * D * itemsize                     # double-buffered output
    if path == "matmul":
        extra = onehot_bytes + tile_b * v_pad * 4 + 2 * tile_b * S * 4
    else:
        extra = 2 * tile_b * D * 4                           # accumulators + block
    needed = table_vmem + out_vmem + extra + (4 << 20)
    if needed > (100 << 20):
        # TODO(synk): HBM fallback (memory_space=pl.ANY table + manual per-row
        # make_async_copy gather into a rotating VMEM row buffer) for tables that
        # do not fit in VMEM (v7x: keep resident tables under ~56 MiB / use bf16).
        raise NotImplementedError(
            f"embedding table needs ~{needed >> 20} MiB of VMEM; HBM-gather "
            "fallback not implemented")
    vmem_limit = int(min(max(needed, 32 << 20), 100 << 20))

    compiler_params = pltpu.CompilerParams(
        dimension_semantics=("parallel",),          # megacore across batch tiles
        vmem_limit_bytes=vmem_limit,
    )
    out_shape = jax.ShapeDtypeStruct((b_pad, D), table.dtype)

    if path == "matmul":
        table_p = table if v_pad == V else jnp.pad(table, ((0, v_pad - V), (0, 0)))
        kernel = functools.partial(_counts_matmul_kernel, seq_len=S)
        out = pl.pallas_call(
            kernel,
            out_shape=out_shape,
            grid=(num_tiles,),
            in_specs=[
                pl.BlockSpec((tile_b, S), lambda t: (t, 0)),            # ids block
                pl.BlockSpec(memory_space=pltpu.MemorySpace.VMEM),      # full table
            ],
            out_specs=pl.BlockSpec((tile_b, D), lambda t: (t, 0)),
            compiler_params=compiler_params,
        )(ids, table_p)
    else:
        # TODO(synk): for very large B*S, block ids per batch tile instead of
        # scalar-prefetching the whole array (1-D SMEM pads to next pow2).
        kernel = functools.partial(_gather_kernel, seq_len=S, tile_b=tile_b)
        out = pl.pallas_call(
            kernel,
            out_shape=out_shape,
            grid_spec=pltpu.PrefetchScalarGridSpec(
                num_scalar_prefetch=1,                                  # ids -> SMEM
                grid=(num_tiles,),
                in_specs=[
                    pl.BlockSpec(memory_space=pltpu.MemorySpace.VMEM),  # full table
                ],
                out_specs=pl.BlockSpec((tile_b, D), lambda t, ids: (t, 0)),
            ),
            compiler_params=compiler_params,
        )(ids.reshape(-1), table)

    return out[:B]


if __name__ == "__main__":
    # Small, deterministic setup consistent with TextAdapter(vocab_size, d_model=128)
    B, S = 2, 8
    vocab_size, d_model = 32, 128

    key = jax.random.PRNGKey(0)
    k_table, k_ids = jax.random.split(key)

    # nn.Embedding default init: N(0, 1)
    embedding_table = jax.random.normal(k_table, (vocab_size, d_model), jnp.float32)
    x = jax.random.randint(k_ids, (B, S), 0, vocab_size, jnp.int32)

    # Pure-JAX reference: embedding lookup + mean over dim=1
    ref = jnp.take(embedding_table, x, axis=0).mean(axis=1)

    # Default dispatch: small vocab -> MXU counts-matmul path.
    out = jax.block_until_ready(text_adapter_forward(x, embedding_table))
    assert out.shape == (B, d_model)
    assert jnp.allclose(out, ref, atol=1e-5, rtol=1e-5), "matmul path mismatch"

    # Also exercise the general gather path (used for large vocabularies).
    out_g = jax.block_until_ready(
        text_adapter_forward(x, embedding_table, path="gather"))
    assert jnp.allclose(out_g, ref, atol=1e-5, rtol=1e-5), "gather path mismatch"

    print("KERNEL_OK")
</pallas_src>

<mosaic_0001>
module attributes {stable_mosaic.version = 11 : i64} {
  func.func @_counts_matmul_kernel(%arg0: i32, %arg1: memref<8x8xi32, #tpu.memory_space<vmem>>, %arg2: memref<128x128xf32, #tpu.memory_space<vmem>>, %arg3: memref<8x128xf32, #tpu.memory_space<vmem>>) attributes {dimension_semantics = [#tpu.dimension_semantics<parallel>], iteration_bounds = array<i64: 1>, scalar_prefetch = 0 : i64, scratch_operands = 0 : i64, tpu.core_type = #tpu.core_type<tc>, window_params = [{transform_indices = @transform_0, window_bounds = array<i64: 8, 8>}, {pipeline_mode = #tpu.pipeline_mode<synchronous>, transform_indices = @transform_1, window_bounds = array<i64: 128, 128>}, {transform_indices = @transform_2, window_bounds = array<i64: 8, 128>}]} {
    %c0 = arith.constant 0 : index
    %c0_0 = arith.constant 0 : index
    %0 = vector.load %arg1[%c0, %c0_0] : memref<8x8xi32, #tpu.memory_space<vmem>>, vector<8x8xi32>
    %1 = tpu.iota {dimensions = array<i32: 2>} : vector<8x8x128xi32>
    %2 = vector.shape_cast %0 : vector<8x8xi32> to vector<8x8x1xi32>
    %3 = vector.broadcast %2 : vector<8x8x1xi32> to vector<8x8x128xi32>
    %4 = arith.cmpi eq, %3, %1 : vector<8x8x128xi32>
    %5 = arith.extui %4 : vector<8x8x128xi1> to vector<8x8x128xi32>
    %6 = arith.sitofp %5 : vector<8x8x128xi32> to vector<8x8x128xf32>
    %cst = arith.constant dense<0.000000e+00> : vector<8x128xf32>
    %7 = vector.multi_reduction <add>, %6, %cst [1] : vector<8x8x128xf32> to vector<8x128xf32>
    %c0_1 = arith.constant 0 : index
    %c0_2 = arith.constant 0 : index
    %8 = vector.load %arg2[%c0_1, %c0_2] : memref<128x128xf32, #tpu.memory_space<vmem>>, vector<128x128xf32>
    %cst_3 = arith.constant dense<0.000000e+00> : vector<8x128xf32>
    %9 = tpu.matmul %7, %8, %cst_3 {dimension_numbers = #tpu.dot_dimension_numbers<[1], [0], [0], [1], [0, 0, 1, 1], [], []>} : vector<8x128xf32>, vector<128x128xf32>, vector<8x128xf32> -> vector<8x128xf32>
    %cst_4 = arith.constant 1.250000e-01 : f32
    %10 = vector.broadcast %cst_4 : f32 to vector<8x128xf32>
    %11 = arith.mulf %9, %10 : vector<8x128xf32>
    %c0_5 = arith.constant 0 : index
    %c0_6 = arith.constant 0 : index
    %12 = vector.load %arg3[%c0_5, %c0_6] : memref<8x128xf32, #tpu.memory_space<vmem>>, vector<8x128xf32>
    tpu.vector_store %arg3[%c0_5, %c0_6], %11 {strides = array<i32>} : memref<8x128xf32, #tpu.memory_space<vmem>>, vector<8x128xf32>,
    return
  }
  func.func @transform_0(%arg0: i32) -> (i32, i32) {
    %c0_i32 = arith.constant 0 : i32
    %c0_i32_0 = arith.constant 0 : i32
    return %arg0, %c0_i32 : i32, i32
  }
  func.func @transform_1(%arg0: i32) -> (i32, i32) {
    %c0_i32 = arith.constant 0 : i32
    %c0_i32_0 = arith.constant 0 : i32
    %c0_i32_1 = arith.constant 0 : i32
    return %c0_i32, %c0_i32_0 : i32, i32
  }
  func.func @transform_2(%arg0: i32) -> (i32, i32) {
    %c0_i32 = arith.constant 0 : i32
    %c0_i32_0 = arith.constant 0 : i32
    return %arg0, %c0_i32 : i32, i32
  }
}

</mosaic_0001>

<llo_original>
// kernel: tpu_custom_call.1
$region0: #{tpu_custom_call.1}
  #allocation0 [shape = 'u32[]', space=smem, size = 0x4, offset = 0x4, fixed_abs, tag = 'smem constant byte address 0x4 - core index']
  #allocation1 [shape = 'u32[144,128]{1,0:T(1,128)}', space=vmem, size = 0x12000, scoped, tag = 'internal scratch']
  %s0 = inlined_call_operand.hbm [shape: s32[8,8], index: 0, kind: input, shape index: {}]
  %s1 = inlined_call_operand.hbm [shape: f32[128,128], index: 1, kind: input, shape index: {}]
  %s2 = inlined_call_operand.hbm [shape: f32[8,128], index: 2, kind: output, shape index: {}]
  %s3 = sld [smem:[#allocation0]]
  $region26: #{tpu_custom_call.1} parent=0
    _
  %s5 = ssub.s32 1, %s3
  %s6 = scalar_select 0, %s5, %s3
  $region1: #{tpu_custom_call.1} parent=0
    #allocation2 [shape = 'u8[4096]{0}', space=vmem, size = 0x1000, scoped, tag = 'input window, operand 0, single buffered']
    #allocation3 [shape = 's32[1]{0}', space=sflag, size = 0x4, scoped, tag = 'scoped memory for tpu_custom_call.1']
    #allocation4 [shape = 's32[1]{0}', space=sflag, size = 0x4, scoped, tag = 'scoped memory for tpu_custom_call.1']
    #allocation5 [shape = 'u8[65536]{0}', space=vmem, size = 0x10000, scoped, tag = 'input window, operand 1, single buffered']
    #allocation6 [shape = 's32[1]{0}', space=sflag, size = 0x4, scoped, tag = 'scoped memory for tpu_custom_call.1']
    #allocation7 [shape = 'u8[4096]{0}', space=vmem, size = 0x1000, scoped, tag = 'output window, operand 0, single buffered']
    %7 = vsyncpa [#allocation3], 0
    %8 = vsyncpa [#allocation6], 0
    %9 = vsyncpa [#allocation4], 0
    // Predicated region
    $region2: #{tpu_custom_call.1} parent=1 // pred_check
      _
    $region3: #{tpu_custom_call.1} parent=1 // pred_check_branch
      %11 = sbr.rel (0) target = $region5
    $region4: #{tpu_custom_call.1} parent=1 // pred_region
      %s13 = ssub.s32 128, 128
      %14 = vsyncadd [#allocation3], %s13
      %s16 = sshll.u32 [#allocation2], 4
      %s17 = int_to_ptr.vmem [resolvable:$true] %s16
      %19 = dma.hbm_to_vmem [thread:$0]  %s0, 128, %s17, [#allocation3]
    $region5: #{tpu_custom_call.1} parent=1 // pred_fallthru
      _
    // Predicated region
    $region6: #{tpu_custom_call.1} parent=1 // pred_check
      _
    $region7: #{tpu_custom_call.1} parent=1 // pred_check_branch
      %21 = sbr.rel (0) target = $region9
    $region8: #{tpu_custom_call.1} parent=1 // pred_region
      %s23 = ssub.s32 2048, 2048
      %24 = vsyncadd [#allocation6], %s23
      %s25 = sshll.u32 [#allocation5], 4
      %s26 = int_to_ptr.vmem [resolvable:$true] %s25
      %31 = dma.hbm_to_vmem [thread:$0]  %s1, 2048, %s26, [#allocation6], 128, 128, 8
    $region9: #{tpu_custom_call.1} parent=1 // pred_fallthru
      _
    // Predicated region
    $region10: #{tpu_custom_call.1} parent=1 // pred_check
      _
    $region11: #{tpu_custom_call.1} parent=1 // pred_check_branch
      %33 = sbr.rel (0) target = $region13
    $region12: #{tpu_custom_call.1} parent=1 // pred_region
      %34 = dma.done [#allocation3], 128
    $region13: #{tpu_custom_call.1} parent=1 // pred_fallthru
      _
    // Predicated region
    $region14: #{tpu_custom_call.1} parent=1 // pred_check
      _
    $region15: #{tpu_custom_call.1} parent=1 // pred_check_branch
      %36 = sbr.rel (0) target = $region17
    $region16: #{tpu_custom_call.1} parent=1 // pred_region
      %37 = dma.done [#allocation6], 2048
    $region17: #{tpu_custom_call.1} parent=1 // pred_fallthru
      _
    %v38 = vld [vmem:[#allocation2] sm:$0xff]
    %v39 = vlaneseq
    %v40 = vand.u32 %v39, 127
    %v41 = vlaneseq
    %v42 = vshrl.u32 %v41, 7
    %v43 = vsub.s32 0, %v42
    %v44 = vrot.slane %v38, %v43
    %46 = vbcast.lane.b32.xlu0 %v44, 256
    %v47 = vpop.permute.xlu0 %46
    %v48 = vlaneseq
    %v49 = vshrl.u32 %v48, 7
    %v50 = vsub.s32 1, %v49
    %v51 = vrot.slane %v38, %v50
    %53 = vbcast.lane.b32.xlu0 %v51, 256
    %v54 = vpop.permute.xlu0 %53
    %v55 = vlaneseq
    %v56 = vshrl.u32 %v55, 7
    %v57 = vsub.s32 2, %v56
    %v58 = vrot.slane %v38, %v57
    %60 = vbcast.lane.b32.xlu0 %v58, 256
    %v61 = vpop.permute.xlu0 %60
    %v62 = vlaneseq
    %v63 = vshrl.u32 %v62, 7
    %v64 = vsub.s32 3, %v63
    %v65 = vrot.slane %v38, %v64
    %67 = vbcast.lane.b32.xlu0 %v65, 256
    %v68 = vpop.permute.xlu0 %67
    %v69 = vlaneseq
    %v70 = vshrl.u32 %v69, 7
    %v71 = vsub.s32 4, %v70
    %v72 = vrot.slane %v38, %v71
    %74 = vbcast.lane.b32.xlu0 %v72, 256
    %v75 = vpop.permute.xlu0 %74
    %v76 = vlaneseq
    %v77 = vshrl.u32 %v76, 7
    %v78 = vsub.s32 5, %v77
    %v79 = vrot.slane %v38, %v78
    %81 = vbcast.lane.b32.xlu0 %v79, 256
    %v82 = vpop.permute.xlu0 %81
    %v83 = vlaneseq
    %v84 = vshrl.u32 %v83, 7
    %v85 = vsub.s32 6, %v84
    %v86 = vrot.slane %v38, %v85
    %88 = vbcast.lane.b32.xlu0 %v86, 256
    %v89 = vpop.permute.xlu0 %88
    %v90 = vlaneseq
    %v91 = vshrl.u32 %v90, 7
    %v92 = vsub.s32 7, %v91
    %v93 = vrot.slane %v38, %v92
    %95 = vbcast.lane.b32.xlu0 %v93, 256
    %v96 = vpop.permute.xlu0 %95
    %vm97 = vcmp.eq.s32.totalorder %v47, %v40
    %vm98 = vcmp.eq.s32.totalorder %v54, %v40
    %vm99 = vcmp.eq.s32.totalorder %v61, %v40
    %vm100 = vcmp.eq.s32.totalorder %v68, %v40
    %vm101 = vcmp.eq.s32.totalorder %v75, %v40
    %vm102 = vcmp.eq.s32.totalorder %v82, %v40
    %vm103 = vcmp.eq.s32.totalorder %v89, %v40
    %vm104 = vcmp.eq.s32.totalorder %v96, %v40
    %v105 = vsel %vm97, 1, 0
    %v106 = vsel %vm98, 1, 0
    %v107 = vsel %vm99, 1, 0
    %v108 = vsel %vm100, 1, 0
    %v109 = vsel %vm101, 1, 0
    %v110 = vsel %vm102, 1, 0
    %v111 = vsel %vm103, 1, 0
    %v112 = vsel %vm104, 1, 0
    %v113 = vcvt.s32.f32 %v105
    %v114 = vcvt.s32.f32 %v106
    %v115 = vcvt.s32.f32 %v107
    %v116 = vcvt.s32.f32 %v108
    %v117 = vcvt.s32.f32 %v109
    %v118 = vcvt.s32.f32 %v110
    %v119 = vcvt.s32.f32 %v111
    %v120 = vcvt.s32.f32 %v112
    %v121 = vrot.slane %v113, 4
    %v122 = vadd.f32 %v113, %v121
    %v123 = vrot.slane %v122, 2
    %v124 = vadd.f32 %v122, %v123
    %v125 = vrot.slane %v124, 1
    %v126 = vadd.f32 %v124, %v125
    %v127 = vrot.slane %v114, 4
    %v128 = vadd.f32 %v114, %v127
    %v129 = vrot.slane %v128, 2
    %v130 = vadd.f32 %v128, %v129
    %v131 = vrot.slane %v130, 1
    %v132 = vadd.f32 %v130, %v131
    %v133 = vrot.slane %v115, 4
    %v134 = vadd.f32 %v115, %v133
    %v135 = vrot.slane %v134, 2
    %v136 = vadd.f32 %v134, %v135
    %v137 = vrot.slane %v136, 1
    %v138 = vadd.f32 %v136, %v137
    %v139 = vrot.slane %v116, 4
    %v140 = vadd.f32 %v116, %v139
    %v141 = vrot.slane %v140, 2
    %v142 = vadd.f32 %v140, %v141
    %v143 = vrot.slane %v142, 1
    %v144 = vadd.f32 %v142, %v143
    %v145 = vrot.slane %v117, 4
    %v146 = vadd.f32 %v117, %v145
    %v147 = vrot.slane %v146, 2
    %v148 = vadd.f32 %v146, %v147
    %v149 = vrot.slane %v148, 1
    %v150 = vadd.f32 %v148, %v149
    %v151 = vrot.slane %v118, 4
    %v152 = vadd.f32 %v118, %v151
    %v153 = vrot.slane %v152, 2
    %v154 = vadd.f32 %v152, %v153
    %v155 = vrot.slane %v154, 1
    %v156 = vadd.f32 %v154, %v155
    %v157 = vrot.slane %v119, 4
    %v158 = vadd.f32 %v119, %v157
    %v159 = vrot.slane %v158, 2
    %v160 = vadd.f32 %v158, %v159
    %v161 = vrot.slane %v160, 1
    %v162 = vadd.f32 %v160, %v161
    %v163 = vrot.slane %v120, 4
    %v164 = vadd.f32 %v120, %v163
    %v165 = vrot.slane %v164, 2
    %v166 = vadd.f32 %v164, %v165
    %v167 = vrot.slane %v166, 1
    %v168 = vadd.f32 %v166, %v167
    %v169 = vld [vmem:[#allocation5] sm:$0xff]
    %v170 = vld [vmem:[#allocation5 + $0x8] sm:$0xff]
    %v171 = vld [vmem:[#allocation5 + $0x10] sm:$0xff]
    %v172 = vld [vmem:[#allocation5 + $0x18] sm:$0xff]
    %v173 = vld [vmem:[#allocation5 + $0x20] sm:$0xff]
    %v174 = vld [vmem:[#allocation5 + $0x28] sm:$0xff]
    %v175 = vld [vmem:[#allocation5 + $0x30] sm:$0xff]
    %v176 = vld [vmem:[#allocation5 + $0x38] sm:$0xff]
    %v177 = vld [vmem:[#allocation5 + $0x40] sm:$0xff]
    %v178 = vld [vmem:[#allocation5 + $0x48] sm:$0xff]
    %v179 = vld [vmem:[#allocation5 + $0x50] sm:$0xff]
    %v180 = vld [vmem:[#allocation5 + $0x58] sm:$0xff]
    %v181 = vld [vmem:[#allocation5 + $0x60] sm:$0xff]
    %v182 = vld [vmem:[#allocation5 + $0x68] sm:$0xff]
    %v183 = vld [vmem:[#allocation5 + $0x70] sm:$0xff]
    %v184 = vld [vmem:[#allocation5 + $0x78] sm:$0xff]
    %vm193 = vcmask 1041409
    %v194 = vsel %vm193, %v132, %v126
    %vm195 = vcmask 1042434
    %v196 = vsel %vm195, %v138, %v194
    %vm197 = vcmask 1043459
    %v198 = vsel %vm197, %v144, %v196
    %vm199 = vcmask 1044484
    %v200 = vsel %vm199, %v150, %v198
    %vm201 = vcmask 1045509
    %v202 = vsel %vm201, %v156, %v200
    %vm203 = vcmask 1046534
    %v204 = vsel %vm203, %v162, %v202
    %vm205 = vcmask 1047559
    %v206 = vsel %vm205, %v168, %v204
    %208 = vmatprep.subr.mxu0 0.0
    %209 = vmatpush1.msra.mxu0 %v184
    %210 = vmatprep.subr.mxu0 0.0
    %211 = vmatpush1.msra.mxu0 %v183
    %212 = vmatprep.subr.mxu0 0.0
    %213 = vmatpush1.msra.mxu0 %v182
    %214 = vmatprep.subr.mxu0 0.0
    %215 = vmatpush1.msra.mxu0 %v181
    %216 = vmatprep.subr.mxu0 0.0
    %217 = vmatpush1.msra.mxu0 %v180
    %218 = vmatprep.subr.mxu0 0.0
    %219 = vmatpush1.msra.mxu0 %v179
    %220 = vmatprep.subr.mxu0 0.0
    %221 = vmatpush1.msra.mxu0 %v178
    %222 = vmatprep.subr.mxu0 0.0
    %223 = vmatpush1.msra.mxu0 %v177
    %224 = vmatprep.subr.mxu0 0.0
    %225 = vmatpush1.msra.mxu0 %v176
    %226 = vmatprep.subr.mxu0 0.0
    %227 = vmatpush1.msra.mxu0 %v175
    %228 = vmatprep.subr.mxu0 0.0
    %229 = vmatpush1.msra.mxu0 %v174
    %230 = vmatprep.subr.mxu0 0.0
    %231 = vmatpush1.msra.mxu0 %v173
    %232 = vmatprep.subr.mxu0 0.0
    %233 = vmatpush1.msra.mxu0 %v172
    %234 = vmatprep.subr.mxu0 0.0
    %235 = vmatpush1.msra.mxu0 %v171
    %236 = vmatprep.subr.mxu0 0.0
    %237 = vmatpush1.msra.mxu0 %v170
    %238 = vmatprep.subr.mxu0 0.0
    %239 = vmatpush1.msra.mxu0 %v169
    %240 = vmatprep.subr.mxu0 0.0
    %241 = vmatpush2.msra.mxu0 0.0
    %242 = vmatprep.subr.mxu0 0.0
    %243 = vmatpush2.msra.mxu0 0.0
    %244 = vmatprep.subr.mxu0 0.0
    %245 = vmatpush2.msra.mxu0 0.0
    %246 = vmatprep.subr.mxu0 0.0
    %247 = vmatpush2.msra.mxu0 0.0
    %248 = vmatprep.subr.mxu0 0.0
    %249 = vmatpush2.msra.mxu0 0.0
    %250 = vmatprep.subr.mxu0 0.0
    %251 = vmatpush2.msra.mxu0 0.0
    %252 = vmatprep.subr.mxu0 0.0
    %253 = vmatpush2.msra.mxu0 0.0
    %254 = vmatprep.subr.mxu0 0.0
    %255 = vmatpush2.msra.mxu0 0.0
    %256 = vmatprep.subr.mxu0 0.0
    %257 = vmatpush2.msra.mxu0 0.0
    %258 = vmatprep.subr.mxu0 0.0
    %259 = vmatpush2.msra.mxu0 0.0
    %260 = vmatprep.subr.mxu0 0.0
    %261 = vmatpush2.msra.mxu0 0.0
    %262 = vmatprep.subr.mxu0 0.0
    %263 = vmatpush2.msra.mxu0 0.0
    %264 = vmatprep.subr.mxu0 0.0
    %265 = vmatpush2.msra.mxu0 0.0
    %266 = vmatprep.subr.mxu0 0.0
    %267 = vmatpush2.msra.mxu0 0.0
    %268 = vmatprep.subr.mxu0 0.0
    %269 = vmatpush2.msra.mxu0 0.0
    %270 = vmatprep.subr.mxu0 0.0
    %271 = vmatpush2.msra.mxu0 0.0
    %272 = vmatprep.mubr.f32.mxu0 0.0
    %273 = vmatmul.mubr.f32.gmra.mxu0 %v206
    %v274 = vpop.f32.mrf.mxu0
    %v275 = vadd.f32 0.0, %v274
    %v276 = vpop.f32.mrf.mxu0
    %277 = vdwg.mxu0
    %v278 = vmul.f32 %v275, 0.125
    %279 = vst [vmem:[#allocation7] sm:$0xff] %v278
    // Predicated region
    $region18: #{tpu_custom_call.1} parent=1 // pred_check
      _
    $region19: #{tpu_custom_call.1} parent=1 // pred_check_branch
      %281 = sbr.rel (0) target = $region21
    $region20: #{tpu_custom_call.1} parent=1 // pred_region
      %s283 = ssub.s32 128, 128
      %284 = vsyncadd [#allocation4], %s283
      %s286 = sshll.u32 [#allocation7], 4
      %s287 = int_to_ptr.vmem [resolvable:$true] %s286
      %289 = dma.vmem_to_hbm [thread:$0]  %s287, 128, %s2, [#allocation4]
    $region21: #{tpu_custom_call.1} parent=1 // pred_fallthru
      _
    // Predicated region
    $region22: #{tpu_custom_call.1} parent=1 // pred_check
      _
    $region23: #{tpu_custom_call.1} parent=1 // pred_check_branch
      %291 = sbr.rel (0) target = $region25
    $region24: #{tpu_custom_call.1} parent=1 // pred_region
      %292 = dma.done [#allocation4], 128
    $region25: #{tpu_custom_call.1} parent=1 // pred_fallthru
      _
    %293 = vsyncpa [#allocation3], 1
    %294 = vsyncpa [#allocation6], 1
    %295 = vsyncpa [#allocation4], 1

</llo_original>
